<compile_context>
chip_gen: v6e
topology: v6e:2x2x1
jax: 0.10.0
libtpu: 0.0.40
codegen_flags: <defaults>
</compile_context>

<pallas_src>
import functools

import jax
import jax.numpy as jnp
from jax.experimental import pallas as pl
from jax.experimental.pallas import tpu as pltpu

LANE = 128
SUBLANE = 8


def _round_up(n, m):
    return ((n + m - 1) // m) * m


def _device_kind():
    try:
        return jax.devices()[0].device_kind.lower()
    except Exception:
        return ""


def _mxu_lane_multiple():
    # v6e / v7x MXUs are 2x256^2 -> 256-aligned N dims fill the array per pass.
    # v5e (4x128^2) and unknown chips stay at 128.
    kind = _device_kind()
    return 256 if any(t in kind for t in ("v6", "v7", "7x")) else 128


def _vmem_limit_bytes():
    kind = _device_kind()
    if any(t in kind for t in ("v7", "7x")):
        return 48 << 20          # v7x: 64 MiB physical per TensorCore
    if any(t in kind for t in ("v5", "v6")):
        return 96 << 20          # v5e / v6e: 128 MiB physical
    return 48 << 20              # conservative default


def _pad_k(input_dim):
    """Pad the first matmul's K dim: 128-aligned if the relative padding is
    cheap, otherwise just the bf16 sublane-packing quantum (16)."""
    if input_dim >= 128 or _round_up(input_dim, 128) <= 1.25 * input_dim:
        return _round_up(input_dim, 128)
    return _round_up(input_dim, 16)


def _choose_tile_b(batch, bytes_per_row, fixed_bytes, budget_bytes):
    """Largest batch tile (multiple of 8, <=1024) that
       * fits the VMEM budget (streamed rows double-buffered + fixed weights),
       * gives >=4 grid steps when the batch permits (v7x megacore + pipelining),
       * pads the batch by at most ~10%."""
    b8 = _round_up(max(batch, 1), SUBLANE)
    target_steps = min(4, b8 // SUBLANE)
    step_cap = max(SUBLANE, (b8 // target_steps) // SUBLANE * SUBLANE)
    for cand in (1024, 512, 256, 128, 64, 32, 16, 8):
        if cand > b8 or cand > step_cap:
            continue
        if fixed_bytes + cand * bytes_per_row > budget_bytes:
            continue
        if cand != SUBLANE and _round_up(batch, cand) > 1.1 * batch:
            continue
        return cand
    return SUBLANE


# ----------------------------------------------------------------------------
# Kernel
# ----------------------------------------------------------------------------
def encoder_kernel(x_ref, eps_ref, w1_ref, b1_ref, w2_ref, b2_ref,
                   z_ref, mean_ref, lv_ref, *, l_pad, latent_dim):
    # Layer 1: bf16 operands on the MXU, f32 accumulation, f32 epilogue (VPU).
    h = jnp.dot(x_ref[...], w1_ref[...],
                preferred_element_type=jnp.float32) + b1_ref[...]
    h = jnp.maximum(h, 0.0)

    # Layer 2: fused [mean | log_var] projection — one matmul, packed result.
    mv = jnp.dot(h.astype(jnp.bfloat16), w2_ref[...],
                 preferred_element_type=jnp.float32) + b2_ref[...]
    mean = mv[:, :latent_dim]                       # column 0 (aligned start)
    log_var = mv[:, l_pad:l_pad + latent_dim]       # 128-aligned start

    # Reparameterization epilogue in f32: exp hits the EUP, mul-add the VPU.
    std = jnp.exp(0.5 * log_var)
    z = mean + std * eps_ref[...]

    # Compact per-quantity stores (width = latent_dim): minimal HBM writeback.
    z_ref[...] = z.astype(z_ref.dtype)
    mean_ref[...] = mean.astype(mean_ref.dtype)
    lv_ref[...] = log_var.astype(lv_ref.dtype)


# ----------------------------------------------------------------------------
# Wrapper
# ----------------------------------------------------------------------------
def encoder_forward(x, packed, eps, latent_dim):
    """x: [B, input_dim] f32, eps: [B, latent_dim] f32, packed: see pack_params."""
    B, input_dim = x.shape
    h_pad, l_pad, k_pad = packed["h_pad"], packed["l_pad"], packed["k_pad"]

    vmem_limit = _vmem_limit_bytes()
    budget = int(vmem_limit * 0.8)           # headroom for compiler temps

    # Per-batch-row streamed bytes (double-buffered) + live f32 intermediates.
    bytes_per_row = (
        2 * (2 * k_pad)                       # x  (bf16, 2x buffered)
        + 2 * (4 * latent_dim)                # eps (f32, 2x buffered)
        + 2 * (3 * 4 * latent_dim)            # z / mean / log_var outputs (2x)
        + 4 * (h_pad + 2 * l_pad + 4 * latent_dim)   # h, mv, epilogue temps
    )
    # Resident weights/biases still get double-buffered by BlockSpec -> count 2x.
    fixed_bytes = 2 * (2 * k_pad * h_pad + 2 * h_pad * (2 * l_pad)
                       + 4 * h_pad + 4 * (2 * l_pad))

    tile_b = _choose_tile_b(B, bytes_per_row, fixed_bytes, budget)
    b_pad = _round_up(B, tile_b)
    pad_b = b_pad - B

    # bf16 cast once here; pad batch / K only when actually needed.
    x_bf16 = x.astype(jnp.bfloat16)
    if pad_b or k_pad > input_dim:
        x_p = jnp.pad(x_bf16, ((0, pad_b), (0, k_pad - input_dim)))
    else:
        x_p = x_bf16
    eps_p = jnp.pad(eps, ((0, pad_b), (0, 0))) if pad_b else eps

    kernel = functools.partial(encoder_kernel, l_pad=l_pad, latent_dim=latent_dim)

    out_sds = jax.ShapeDtypeStruct((b_pad, latent_dim), jnp.float32)
    out_spec = pl.BlockSpec((tile_b, latent_dim), lambda i: (i, 0))

    z, mean, log_var = pl.pallas_call(
        kernel,
        out_shape=(out_sds, out_sds, out_sds),
        grid=(b_pad // tile_b,),
        in_specs=[
            pl.BlockSpec((tile_b, k_pad), lambda i: (i, 0)),        # x   (bf16, streamed)
            pl.BlockSpec((tile_b, latent_dim), lambda i: (i, 0)),   # eps (f32, streamed)
            pl.BlockSpec((k_pad, h_pad), lambda i: (0, 0)),         # W1  (resident)
            pl.BlockSpec((1, h_pad), lambda i: (0, 0)),             # b1  (resident)
            pl.BlockSpec((h_pad, 2 * l_pad), lambda i: (0, 0)),     # W2  (resident)
            pl.BlockSpec((1, 2 * l_pad), lambda i: (0, 0)),         # b2  (resident)
        ],
        out_specs=(out_spec, out_spec, out_spec),
        compiler_params=pltpu.CompilerParams(
            dimension_semantics=("parallel",),     # shard batch across TCs on v7x
            vmem_limit_bytes=vmem_limit,
        ),
    )(x_p, eps_p, packed["w1"], packed["b1"], packed["w2"], packed["b2"])

    if pad_b:
        z, mean, log_var = z[:B], mean[:B], log_var[:B]
    return z, mean, log_var


# ----------------------------------------------------------------------------
# Parameter packing (PyTorch nn.Linear convention -> padded/fused bf16 kernel params)
# ----------------------------------------------------------------------------
def pack_params(raw, input_dim, hidden_dim, latent_dim):
    """raw weights are [out, in] (nn.Linear); biases are [out]."""
    lane_mult = _mxu_lane_multiple()
    k_pad = _pad_k(input_dim)
    h_pad = _round_up(hidden_dim, lane_mult)      # 256-aligned on v6e/v7x
    l_pad = _round_up(latent_dim, LANE)           # 2*l_pad is a multiple of 256

    w1 = jnp.zeros((k_pad, h_pad), jnp.float32)
    w1 = w1.at[:input_dim, :hidden_dim].set(raw["w_in"].T)
    b1 = jnp.zeros((1, h_pad), jnp.float32).at[:, :hidden_dim].set(raw["b_in"][None, :])

    w2 = jnp.zeros((h_pad, 2 * l_pad), jnp.float32)
    w2 = w2.at[:hidden_dim, :latent_dim].set(raw["w_mean"].T)
    w2 = w2.at[:hidden_dim, l_pad:l_pad + latent_dim].set(raw["w_var"].T)
    b2 = jnp.zeros((1, 2 * l_pad), jnp.float32)
    b2 = b2.at[:, :latent_dim].set(raw["b_mean"][None, :])
    b2 = b2.at[:, l_pad:l_pad + latent_dim].set(raw["b_var"][None, :])

    return {
        "w1": w1.astype(jnp.bfloat16), "b1": b1,     # weights bf16, biases f32
        "w2": w2.astype(jnp.bfloat16), "b2": b2,
        "k_pad": k_pad, "h_pad": h_pad, "l_pad": l_pad,
    }


def init_raw_params(key, input_dim, hidden_dim, latent_dim):
    """Deterministic synthetic init with nn.Linear shapes ([out, in] / [out])."""
    ks = jax.random.split(key, 6)
    s_in = 1.0 / jnp.sqrt(input_dim)
    s_h = 1.0 / jnp.sqrt(hidden_dim)
    return {
        "w_in": jax.random.uniform(ks[0], (hidden_dim, input_dim), jnp.float32, -s_in, s_in),
        "b_in": jax.random.uniform(ks[1], (hidden_dim,), jnp.float32, -s_in, s_in),
        "w_mean": jax.random.uniform(ks[2], (latent_dim, hidden_dim), jnp.float32, -s_h, s_h),
        "b_mean": jax.random.uniform(ks[3], (latent_dim,), jnp.float32, -s_h, s_h),
        "w_var": jax.random.uniform(ks[4], (latent_dim, hidden_dim), jnp.float32, -s_h, s_h),
        "b_var": jax.random.uniform(ks[5], (latent_dim,), jnp.float32, -s_h, s_h),
    }


# ----------------------------------------------------------------------------
# References
# ----------------------------------------------------------------------------
def reference_f32(x, raw, eps):
    """Exact PyTorch-semantics reference (pure f32, unpadded)."""
    h = jnp.maximum(x @ raw["w_in"].T + raw["b_in"], 0.0)
    mean = h @ raw["w_mean"].T + raw["b_mean"]
    log_var = h @ raw["w_var"].T + raw["b_var"]
    std = jnp.exp(0.5 * log_var)
    return mean + std * eps, mean, log_var


def reference_bf16_mimic(x, packed, eps, latent_dim):
    """Mirrors the kernel numerics: bf16 matmul operands, f32 accumulation."""
    l_pad = packed["l_pad"]
    input_dim = x.shape[1]
    w1 = packed["w1"].astype(jnp.float32)[:input_dim]     # drop zero K padding
    w2 = packed["w2"].astype(jnp.float32)
    hp = jax.lax.Precision.HIGHEST
    xb = x.astype(jnp.bfloat16).astype(jnp.float32)
    h = jnp.maximum(jnp.dot(xb, w1, precision=hp) + packed["b1"], 0.0)
    hb = h.astype(jnp.bfloat16).astype(jnp.float32)
    mv = jnp.dot(hb, w2, precision=hp) + packed["b2"]
    mean = mv[:, :latent_dim]
    log_var = mv[:, l_pad:l_pad + latent_dim]
    std = jnp.exp(0.5 * log_var)
    return mean + std * eps, mean, log_var


# ----------------------------------------------------------------------------
if __name__ == "__main__":
    key = jax.random.PRNGKey(0)
    k_params, k_x, k_eps = jax.random.split(key, 3)

    batch, input_dim, hidden_dim, latent_dim = 8, 16, 32, 8

    raw = init_raw_params(k_params, input_dim, hidden_dim, latent_dim)
    packed = pack_params(raw, input_dim, hidden_dim, latent_dim)

    x = jax.random.normal(k_x, (batch, input_dim), jnp.float32)
    # torch.rand_like -> Uniform[0,1) noise, generated in glue and fed to the
    # kernel (the elementwise reparameterization itself runs on-chip).
    eps = jax.random.uniform(k_eps, (batch, latent_dim), jnp.float32)

    z, mean, log_var = encoder_forward(x, packed, eps, latent_dim)
    jax.block_until_ready((z, mean, log_var))

    # Tight check vs. a reference that mimics the kernel's bf16-operand / f32-acc math.
    z_m, mean_m, lv_m = reference_bf16_mimic(x, packed, eps, latent_dim)
    assert jnp.allclose(z, z_m, atol=1e-3, rtol=1e-3)
    assert jnp.allclose(mean, mean_m, atol=1e-3, rtol=1e-3)
    assert jnp.allclose(log_var, lv_m, atol=1e-3, rtol=1e-3)

    # Loose check vs. the exact f32 PyTorch semantics (difference = bf16 operand cast).
    z_r, mean_r, lv_r = reference_f32(x, raw, eps)
    assert jnp.allclose(z, z_r, atol=5e-2, rtol=5e-2)
    assert jnp.allclose(mean, mean_r, atol=5e-2, rtol=5e-2)
    assert jnp.allclose(log_var, lv_r, atol=5e-2, rtol=5e-2)

    print("KERNEL_OK")
</pallas_src>

<mosaic_0001>
module attributes {stable_mosaic.version = 11 : i64} {
  func.func @encoder_kernel(%arg0: i32, %arg1: memref<8x16xbf16, #tpu.memory_space<vmem>>, %arg2: memref<8x8xf32, #tpu.memory_space<vmem>>, %arg3: memref<16x128xbf16, #tpu.memory_space<vmem>>, %arg4: memref<1x128xf32, #tpu.memory_space<vmem>>, %arg5: memref<128x256xbf16, #tpu.memory_space<vmem>>, %arg6: memref<1x256xf32, #tpu.memory_space<vmem>>, %arg7: memref<8x8xf32, #tpu.memory_space<vmem>>, %arg8: memref<8x8xf32, #tpu.memory_space<vmem>>, %arg9: memref<8x8xf32, #tpu.memory_space<vmem>>) attributes {dimension_semantics = [#tpu.dimension_semantics<parallel>], iteration_bounds = array<i64: 1>, scalar_prefetch = 0 : i64, scratch_operands = 0 : i64, tpu.core_type = #tpu.core_type<tc>, window_params = [{transform_indices = @transform_0, window_bounds = array<i64: 8, 16>}, {transform_indices = @transform_1, window_bounds = array<i64: 8, 8>}, {pipeline_mode = #tpu.pipeline_mode<synchronous>, transform_indices = @transform_2, window_bounds = array<i64: 16, 128>}, {pipeline_mode = #tpu.pipeline_mode<synchronous>, transform_indices = @transform_3, window_bounds = array<i64: 1, 128>}, {pipeline_mode = #tpu.pipeline_mode<synchronous>, transform_indices = @transform_4, window_bounds = array<i64: 128, 256>}, {pipeline_mode = #tpu.pipeline_mode<synchronous>, transform_indices = @transform_5, window_bounds = array<i64: 1, 256>}, {transform_indices = @transform_6, window_bounds = array<i64: 8, 8>}, {transform_indices = @transform_7, window_bounds = array<i64: 8, 8>}, {transform_indices = @transform_8, window_bounds = array<i64: 8, 8>}]} {
    %c0 = arith.constant 0 : index
    %c0_0 = arith.constant 0 : index
    %0 = vector.load %arg1[%c0, %c0_0] : memref<8x16xbf16, #tpu.memory_space<vmem>>, vector<8x16xbf16>
    %c0_1 = arith.constant 0 : index
    %c0_2 = arith.constant 0 : index
    %1 = vector.load %arg3[%c0_1, %c0_2] : memref<16x128xbf16, #tpu.memory_space<vmem>>, vector<16x128xbf16>
    %cst = arith.constant dense<0.000000e+00> : vector<8x128xf32>
    %2 = tpu.matmul %0, %1, %cst {dimension_numbers = #tpu.dot_dimension_numbers<[1], [0], [0], [1], [0, 0, 1, 1], [], []>} : vector<8x16xbf16>, vector<16x128xbf16>, vector<8x128xf32> -> vector<8x128xf32>
    %c0_3 = arith.constant 0 : index
    %c0_4 = arith.constant 0 : index
    %3 = vector.load %arg4[%c0_3, %c0_4] : memref<1x128xf32, #tpu.memory_space<vmem>>, vector<1x128xf32>
    %4 = vector.broadcast %3 : vector<1x128xf32> to vector<8x128xf32>
    %5 = arith.addf %2, %4 : vector<8x128xf32>
    %cst_5 = arith.constant 0.000000e+00 : f32
    %6 = vector.broadcast %cst_5 : f32 to vector<8x128xf32>
    %7 = arith.maximumf %5, %6 : vector<8x128xf32>
    %8 = arith.truncf %7 : vector<8x128xf32> to vector<8x128xbf16>
    %c0_6 = arith.constant 0 : index
    %c0_7 = arith.constant 0 : index
    %9 = vector.load %arg5[%c0_6, %c0_7] : memref<128x256xbf16, #tpu.memory_space<vmem>>, vector<128x256xbf16>
    %cst_8 = arith.constant dense<0.000000e+00> : vector<8x256xf32>
    %10 = tpu.matmul %8, %9, %cst_8 {dimension_numbers = #tpu.dot_dimension_numbers<[1], [0], [0], [1], [0, 0, 1, 1], [], []>} : vector<8x128xbf16>, vector<128x256xbf16>, vector<8x256xf32> -> vector<8x256xf32>
    %c0_9 = arith.constant 0 : index
    %c0_10 = arith.constant 0 : index
    %11 = vector.load %arg6[%c0_9, %c0_10] : memref<1x256xf32, #tpu.memory_space<vmem>>, vector<1x256xf32>
    %12 = vector.broadcast %11 : vector<1x256xf32> to vector<8x256xf32>
    %13 = arith.addf %10, %12 : vector<8x256xf32>
    %14 = vector.extract_strided_slice %13 {offsets = [0, 0], sizes = [8, 8], strides = [1, 1]} : vector<8x256xf32> to vector<8x8xf32>
    %15 = vector.extract_strided_slice %13 {offsets = [0, 128], sizes = [8, 8], strides = [1, 1]} : vector<8x256xf32> to vector<8x8xf32>
    %cst_11 = arith.constant 5.000000e-01 : f32
    %16 = vector.broadcast %cst_11 : f32 to vector<8x8xf32>
    %17 = arith.mulf %16, %15 : vector<8x8xf32>
    %18 = math.exp %17 : vector<8x8xf32>
    %c0_12 = arith.constant 0 : index
    %c0_13 = arith.constant 0 : index
    %19 = vector.load %arg2[%c0_12, %c0_13] : memref<8x8xf32, #tpu.memory_space<vmem>>, vector<8x8xf32>
    %20 = arith.mulf %18, %19 : vector<8x8xf32>
    %21 = arith.addf %14, %20 : vector<8x8xf32>
    %c0_14 = arith.constant 0 : index
    %c0_15 = arith.constant 0 : index
    %22 = vector.load %arg7[%c0_14, %c0_15] : memref<8x8xf32, #tpu.memory_space<vmem>>, vector<8x8xf32>
    tpu.vector_store %arg7[%c0_14, %c0_15], %21 {strides = array<i32>} : memref<8x8xf32, #tpu.memory_space<vmem>>, vector<8x8xf32>,
    %c0_16 = arith.constant 0 : index
    %c0_17 = arith.constant 0 : index
    %23 = vector.load %arg8[%c0_16, %c0_17] : memref<8x8xf32, #tpu.memory_space<vmem>>, vector<8x8xf32>
    tpu.vector_store %arg8[%c0_16, %c0_17], %14 {strides = array<i32>} : memref<8x8xf32, #tpu.memory_space<vmem>>, vector<8x8xf32>,
    %c0_18 = arith.constant 0 : index
    %c0_19 = arith.constant 0 : index
    %24 = vector.load %arg9[%c0_18, %c0_19] : memref<8x8xf32, #tpu.memory_space<vmem>>, vector<8x8xf32>
    tpu.vector_store %arg9[%c0_18, %c0_19], %15 {strides = array<i32>} : memref<8x8xf32, #tpu.memory_space<vmem>>, vector<8x8xf32>,
    return
  }
  func.func @transform_0(%arg0: i32) -> (i32, i32) {
    %c0_i32 = arith.constant 0 : i32
    %c0_i32_0 = arith.constant 0 : i32
    return %arg0, %c0_i32 : i32, i32
  }
  func.func @transform_1(%arg0: i32) -> (i32, i32) {
    %c0_i32 = arith.constant 0 : i32
    %c0_i32_0 = arith.constant 0 : i32
    return %arg0, %c0_i32 : i32, i32
  }
  func.func @transform_2(%arg0: i32) -> (i32, i32) {
    %c0_i32 = arith.constant 0 : i32
    %c0_i32_0 = arith.constant 0 : i32
    %c0_i32_1 = arith.constant 0 : i32
    return %c0_i32, %c0_i32_0 : i32, i32
  }
  func.func @transform_3(%arg0: i32) -> (i32, i32) {
    %c0_i32 = arith.constant 0 : i32
    %c0_i32_0 = arith.constant 0 : i32
    %c0_i32_1 = arith.constant 0 : i32
    return %c0_i32, %c0_i32_0 : i32, i32
  }
  func.func @transform_4(%arg0: i32) -> (i32, i32) {
    %c0_i32 = arith.constant 0 : i32
    %c0_i32_0 = arith.constant 0 : i32
    %c0_i32_1 = arith.constant 0 : i32
    return %c0_i32, %c0_i32_0 : i32, i32
  }
  func.func @transform_5(%arg0: i32) -> (i32, i32) {
    %c0_i32 = arith.constant 0 : i32
    %c0_i32_0 = arith.constant 0 : i32
    %c0_i32_1 = arith.constant 0 : i32
    return %c0_i32, %c0_i32_0 : i32, i32
  }
  func.func @transform_6(%arg0: i32) -> (i32, i32) {
    %c0_i32 = arith.constant 0 : i32
    %c0_i32_0 = arith.constant 0 : i32
    return %arg0, %c0_i32 : i32, i32
  }
  func.func @transform_7(%arg0: i32) -> (i32, i32) {
    %c0_i32 = arith.constant 0 : i32
    %c0_i32_0 = arith.constant 0 : i32
    return %arg0, %c0_i32 : i32, i32
  }
  func.func @transform_8(%arg0: i32) -> (i32, i32) {
    %c0_i32 = arith.constant 0 : i32
    %c0_i32_0 = arith.constant 0 : i32
    return %arg0, %c0_i32 : i32, i32
  }
}

</mosaic_0001>

<llo_original>
// kernel: tpu_custom_call.1
$region0: #{tpu_custom_call.1}
  #allocation0 [shape = 'u32[]', space=smem, size = 0x4, offset = 0x4, fixed_abs, tag = 'smem constant byte address 0x4 - core index']
  #allocation1 [shape = 'u32[144,128]{1,0:T(1,128)}', space=vmem, size = 0x12000, scoped, tag = 'internal scratch']
  %s0 = inlined_call_operand.hbm [shape: bf16[8,16], index: 0, kind: input, shape index: {}]
  %s1 = inlined_call_operand.hbm [shape: f32[8,8], index: 1, kind: input, shape index: {}]
  %s2 = inlined_call_operand.hbm [shape: bf16[16,128], index: 2, kind: input, shape index: {}]
  %s3 = inlined_call_operand.vmem [shape: f32[1,128], index: 3, kind: input, shape index: {}]
  %s4 = inlined_call_operand.hbm [shape: bf16[128,256], index: 4, kind: input, shape index: {}]
  %s5 = inlined_call_operand.vmem [shape: f32[1,256], index: 5, kind: input, shape index: {}]
  %s6 = inlined_call_operand.hbm [shape: f32[8,8], index: 6, kind: output, shape index: {0}]
  %s7 = inlined_call_operand.hbm [shape: f32[8,8], index: 7, kind: output, shape index: {1}]
  %s8 = inlined_call_operand.hbm [shape: f32[8,8], index: 8, kind: output, shape index: {2}]
  %9 = xla_tuple %s6, %s7, %s8
  %s10 = sld [smem:[#allocation0]]
  $region66: #{tpu_custom_call.1} parent=0
    _
  %s12 = ssub.s32 1, %s10
  %s13 = scalar_select 0, %s12, %s10
  $region1: #{tpu_custom_call.1} parent=0
    #allocation2 [shape = 'u8[2048]{0}', space=vmem, size = 0x800, scoped, tag = 'input window, operand 0, single buffered']
    #allocation3 [shape = 's32[1]{0}', space=sflag, size = 0x4, scoped, tag = 'scoped memory for tpu_custom_call.1']
    #allocation4 [shape = 's32[1]{0}', space=sflag, size = 0x4, scoped, tag = 'scoped memory for tpu_custom_call.1']
    #allocation5 [shape = 'u8[4096]{0}', space=vmem, size = 0x1000, scoped, tag = 'input window, operand 1, single buffered']
    #allocation6 [shape = 's32[1]{0}', space=sflag, size = 0x4, scoped, tag = 'scoped memory for tpu_custom_call.1']
    #allocation7 [shape = 'u8[4096]{0}', space=vmem, size = 0x1000, scoped, tag = 'input window, operand 2, single buffered']
    #allocation8 [shape = 'u8[65536]{0}', space=vmem, size = 0x10000, scoped, tag = 'input window, operand 4, single buffered']
    #allocation9 [shape = 's32[1]{0}', space=sflag, size = 0x4, scoped, tag = 'scoped memory for tpu_custom_call.1']
    #allocation10 [shape = 'u8[4096]{0}', space=vmem, size = 0x1000, scoped, tag = 'output window, operand 0, single buffered']
    #allocation11 [shape = 'u8[4096]{0}', space=vmem, size = 0x1000, scoped, tag = 'output window, operand 1, single buffered']
    #allocation12 [shape = 's32[1]{0}', space=sflag, size = 0x4, scoped, tag = 'scoped memory for tpu_custom_call.1']
    #allocation13 [shape = 'u8[4096]{0}', space=vmem, size = 0x1000, scoped, tag = 'output window, operand 2, single buffered']
    %14 = vsyncpa [#allocation3], 0
    %15 = vsyncpa [#allocation6], 0
    %16 = vsyncpa [#allocation9], 0
    %17 = vsyncpa [#allocation4], 0
    %18 = vsyncpa [#allocation12], 0
    // Predicated region
    $region2: #{tpu_custom_call.1} parent=1 // pred_check
      _
    $region3: #{tpu_custom_call.1} parent=1 // pred_check_branch
      %20 = sbr.rel (0) target = $region5
    $region4: #{tpu_custom_call.1} parent=1 // pred_region
      %s22 = ssub.s32 64, 64
      %23 = vsyncadd [#allocation3], %s22
      %s25 = sshll.u32 [#allocation2], 4
      %s26 = int_to_ptr.vmem [resolvable:$true] %s25
      %28 = dma.hbm_to_vmem [thread:$0]  %s0, 64, %s26, [#allocation3]
    $region5: #{tpu_custom_call.1} parent=1 // pred_fallthru
      _
    // Predicated region
    $region6: #{tpu_custom_call.1} parent=1 // pred_check
      _
    $region7: #{tpu_custom_call.1} parent=1 // pred_check_branch
      %30 = sbr.rel (0) target = $region9
    $region8: #{tpu_custom_call.1} parent=1 // pred_region
      %s32 = ssub.s32 128, 128
      %33 = vsyncadd [#allocation6], %s32
      %s35 = sshll.u32 [#allocation5], 4
      %s36 = int_to_ptr.vmem [resolvable:$true] %s35
      %38 = dma.hbm_to_vmem [thread:$0]  %s1, 128, %s36, [#allocation6]
    $region9: #{tpu_custom_call.1} parent=1 // pred_fallthru
      _
    // Predicated region
    $region10: #{tpu_custom_call.1} parent=1 // pred_check
      _
    $region11: #{tpu_custom_call.1} parent=1 // pred_check_branch
      %40 = sbr.rel (0) target = $region13
    $region12: #{tpu_custom_call.1} parent=1 // pred_region
      %s42 = ssub.s32 128, 128
      %43 = vsyncadd [#allocation6], %s42
      %s44 = sshll.u32 [#allocation7], 4
      %s45 = int_to_ptr.vmem [resolvable:$true] %s44
      %50 = dma.hbm_to_vmem [thread:$0]  %s2, 128, %s45, [#allocation6], 64, 64, 4
    $region13: #{tpu_custom_call.1} parent=1 // pred_fallthru
      _
    // Predicated region
    $region14: #{tpu_custom_call.1} parent=1 // pred_check
      _
    $region15: #{tpu_custom_call.1} parent=1 // pred_check_branch
      %52 = sbr.rel (0) target = $region17
    $region16: #{tpu_custom_call.1} parent=1 // pred_region
      _
    $region17: #{tpu_custom_call.1} parent=1 // pred_fallthru
      _
    // Predicated region
    $region18: #{tpu_custom_call.1} parent=1 // pred_check
      _
    $region19: #{tpu_custom_call.1} parent=1 // pred_check_branch
      %54 = sbr.rel (0) target = $region21
    $region20: #{tpu_custom_call.1} parent=1 // pred_region
      %s56 = ssub.s32 2048, 2048
      %57 = vsyncadd [#allocation9], %s56
      %s58 = sshll.u32 [#allocation8], 4
      %s59 = int_to_ptr.vmem [resolvable:$true] %s58
      %64 = dma.hbm_to_vmem [thread:$0]  %s4, 2048, %s59, [#allocation9], 128, 128, 8
    $region21: #{tpu_custom_call.1} parent=1 // pred_fallthru
      _
    // Predicated region
    $region22: #{tpu_custom_call.1} parent=1 // pred_check
      _
    $region23: #{tpu_custom_call.1} parent=1 // pred_check_branch
      %66 = sbr.rel (0) target = $region25
    $region24: #{tpu_custom_call.1} parent=1 // pred_region
      _
    $region25: #{tpu_custom_call.1} parent=1 // pred_fallthru
      _
    // Predicated region
    $region26: #{tpu_custom_call.1} parent=1 // pred_check
      _
    $region27: #{tpu_custom_call.1} parent=1 // pred_check_branch
      %68 = sbr.rel (0) target = $region29
    $region28: #{tpu_custom_call.1} parent=1 // pred_region
      %69 = dma.done [#allocation3], 64
    $region29: #{tpu_custom_call.1} parent=1 // pred_fallthru
      _
    // Predicated region
    $region30: #{tpu_custom_call.1} parent=1 // pred_check
      _
    $region31: #{tpu_custom_call.1} parent=1 // pred_check_branch
      %71 = sbr.rel (0) target = $region33
    $region32: #{tpu_custom_call.1} parent=1 // pred_region
      %72 = dma.done [#allocation6], 128
    $region33: #{tpu_custom_call.1} parent=1 // pred_fallthru
      _
    // Predicated region
    $region34: #{tpu_custom_call.1} parent=1 // pred_check
      _
    $region35: #{tpu_custom_call.1} parent=1 // pred_check_branch
      %74 = sbr.rel (0) target = $region37
    $region36: #{tpu_custom_call.1} parent=1 // pred_region
      %75 = dma.done [#allocation6], 128
    $region37: #{tpu_custom_call.1} parent=1 // pred_fallthru
      _
    // Predicated region
    $region38: #{tpu_custom_call.1} parent=1 // pred_check
      _
    $region39: #{tpu_custom_call.1} parent=1 // pred_check_branch
      %77 = sbr.rel (0) target = $region41
    $region40: #{tpu_custom_call.1} parent=1 // pred_region
      %78 = dma.done [#allocation9], 2048
    $region41: #{tpu_custom_call.1} parent=1 // pred_fallthru
      _
    %v80 = vld [vmem:[#allocation2] sm:$0xf]
    %v81 = vld [vmem:[#allocation7] sm:$0xf]
    %v82 = vld [vmem:[#allocation7 + $0x4] sm:$0xf]
    %v83 = vld [vmem:[%s3] sm:$0x1]
    %v85 = vlaneseq
    %v86 = vshrl.u32 %v85, 7
    %v87 = vsub.s32 0, %v86
    %v88 = vrot.slane %v83, %v87
    %v92 = vunpack.c.l.b16 %v81
    %v93 = vunpack.c.l.b16 %v82
    %v94 = vpack.c.b16 %v93, %v92
    %vm96 = vcmask 130048
    %v98 = vsel %vm96, %v80, 0
    %100 = vmatprep.subr.bf16.mxu0 0
    %101 = vmatpush1.bf16.msra.mxu0 0
    %102 = vmatprep.subr.bf16.mxu0 0
    %103 = vmatpush1.bf16.msra.mxu0 0
    %104 = vmatprep.subr.bf16.mxu0 0
    %105 = vmatpush1.bf16.msra.mxu0 0
    %106 = vmatprep.subr.bf16.mxu0 0
    %107 = vmatpush1.bf16.msra.mxu0 0
    %108 = vmatprep.subr.bf16.mxu0 0
    %109 = vmatpush1.bf16.msra.mxu0 0
    %110 = vmatprep.subr.bf16.mxu0 0
    %111 = vmatpush1.bf16.msra.mxu0 0
    %112 = vmatprep.subr.bf16.mxu0 0
    %113 = vmatpush1.bf16.msra.mxu0 0
    %114 = vmatprep.subr.bf16.mxu0 0
    %115 = vmatpush1.bf16.msra.mxu0 %v94
    %116 = vmatprep.subr.bf16.mxu0 0
    %117 = vmatpush2.bf16.msra.mxu0 0
    %118 = vmatprep.subr.bf16.mxu0 0
    %119 = vmatpush2.bf16.msra.mxu0 0
    %120 = vmatprep.subr.bf16.mxu0 0
    %121 = vmatpush2.bf16.msra.mxu0 0
    %122 = vmatprep.subr.bf16.mxu0 0
    %123 = vmatpush2.bf16.msra.mxu0 0
    %124 = vmatprep.subr.bf16.mxu0 0
    %125 = vmatpush2.bf16.msra.mxu0 0
    %126 = vmatprep.subr.bf16.mxu0 0
    %127 = vmatpush2.bf16.msra.mxu0 0
    %128 = vmatprep.subr.bf16.mxu0 0
    %129 = vmatpush2.bf16.msra.mxu0 0
    %130 = vmatprep.subr.bf16.mxu0 0
    %131 = vmatpush2.bf16.msra.mxu0 0
    %132 = vmatprep.mubr.bf16.mxu0 0
    %133 = vmatmul.mubr.bf16.gmra.mxu0 %v98
    %v134 = vpop.f32.mrf.mxu0
    %v135 = vadd.f32 %v88, %v134
    %v136 = vpop.f32.mrf.mxu0
    %v137 = vpop.f32.mrf.mxu0
    %v138 = vpop.f32.mrf.mxu0
    %139 = vdwg.mxu0
    %v140 = vmax.f32 %v135, 0.0
    %v141 = vpack.c.bf16 %v140, %v140
    %v142 = vld [vmem:[#allocation8] sm:$0xff]
    %v143 = vld [vmem:[#allocation8 + $0x8] sm:$0xff]
    %v144 = vld [vmem:[#allocation8 + $0x10] sm:$0xff]
    %v145 = vld [vmem:[#allocation8 + $0x18] sm:$0xff]
    %v146 = vld [vmem:[#allocation8 + $0x20] sm:$0xff]
    %v147 = vld [vmem:[#allocation8 + $0x28] sm:$0xff]
    %v148 = vld [vmem:[#allocation8 + $0x30] sm:$0xff]
    %v149 = vld [vmem:[#allocation8 + $0x38] sm:$0xff]
    %v150 = vld [vmem:[#allocation8 + $0x40] sm:$0xff]
    %v151 = vld [vmem:[#allocation8 + $0x48] sm:$0xff]
    %v152 = vld [vmem:[#allocation8 + $0x50] sm:$0xff]
    %v153 = vld [vmem:[#allocation8 + $0x58] sm:$0xff]
    %v154 = vld [vmem:[#allocation8 + $0x60] sm:$0xff]
    %v155 = vld [vmem:[#allocation8 + $0x68] sm:$0xff]
    %v156 = vld [vmem:[#allocation8 + $0x70] sm:$0xff]
    %v157 = vld [vmem:[#allocation8 + $0x78] sm:$0xff]
    %v158 = vld [vmem:[%s5] sm:$0x3]
    %v160 = vlaneseq
    %v161 = vshrl.u32 %v160, 7
    %v162 = vsub.s32 0, %v161
    %v163 = vrot.slane %v158, %v162
    %v164 = vlaneseq
    %v165 = vshrl.u32 %v164, 7
    %v166 = vsub.s32 1, %v165
    %v167 = vrot.slane %v158, %v166
    %v186 = vunpack.c.l.b16 %v142
    %v187 = vunpack.c.h.b16 %v142
    %v188 = vunpack.c.l.b16 %v143
    %v189 = vunpack.c.h.b16 %v143
    %v190 = vunpack.c.l.b16 %v144
    %v191 = vunpack.c.h.b16 %v144
    %v192 = vunpack.c.l.b16 %v145
    %v193 = vunpack.c.h.b16 %v145
    %v194 = vunpack.c.l.b16 %v146
    %v195 = vunpack.c.h.b16 %v146
    %v196 = vunpack.c.l.b16 %v147
    %v197 = vunpack.c.h.b16 %v147
    %v198 = vunpack.c.l.b16 %v148
    %v199 = vunpack.c.h.b16 %v148
    %v200 = vunpack.c.l.b16 %v149
    %v201 = vunpack.c.h.b16 %v149
    %v202 = vunpack.c.l.b16 %v150
    %v203 = vunpack.c.h.b16 %v150
    %v204 = vunpack.c.l.b16 %v151
    %v205 = vunpack.c.h.b16 %v151
    %v206 = vunpack.c.l.b16 %v152
    %v207 = vunpack.c.h.b16 %v152
    %v208 = vunpack.c.l.b16 %v153
    %v209 = vunpack.c.h.b16 %v153
    %v210 = vunpack.c.l.b16 %v154
    %v211 = vunpack.c.h.b16 %v154
    %v212 = vunpack.c.l.b16 %v155
    %v213 = vunpack.c.h.b16 %v155
    %v214 = vunpack.c.l.b16 %v156
    %v215 = vunpack.c.h.b16 %v156
    %v216 = vunpack.c.l.b16 %v157
    %v217 = vunpack.c.h.b16 %v157
    %v218 = vpack.c.b16 %v188, %v186
    %v219 = vpack.c.b16 %v189, %v187
    %v220 = vpack.c.b16 %v192, %v190
    %v221 = vpack.c.b16 %v193, %v191
    %v222 = vpack.c.b16 %v196, %v194
    %v223 = vpack.c.b16 %v197, %v195
    %v224 = vpack.c.b16 %v200, %v198
    %v225 = vpack.c.b16 %v201, %v199
    %v226 = vpack.c.b16 %v204, %v202
    %v227 = vpack.c.b16 %v205, %v203
    %v228 = vpack.c.b16 %v208, %v206
    %v229 = vpack.c.b16 %v209, %v207
    %v230 = vpack.c.b16 %v212, %v210
    %v231 = vpack.c.b16 %v213, %v211
    %v232 = vpack.c.b16 %v216, %v214
    %v233 = vpack.c.b16 %v217, %v215
    %250 = vmatprep.subr.bf16.mxu0 %v233
    %251 = vmatpush1.bf16.msra.mxu0 %v232
    %252 = vmatprep.subr.bf16.mxu0 %v231
    %253 = vmatpush1.bf16.msra.mxu0 %v230
    %254 = vmatprep.subr.bf16.mxu0 %v229
    %255 = vmatpush1.bf16.msra.mxu0 %v228
    %256 = vmatprep.subr.bf16.mxu0 %v227
    %257 = vmatpush1.bf16.msra.mxu0 %v226
    %258 = vmatprep.subr.bf16.mxu0 %v225
    %259 = vmatpush1.bf16.msra.mxu0 %v224
    %260 = vmatprep.subr.bf16.mxu0 %v223
    %261 = vmatpush1.bf16.msra.mxu0 %v222
    %262 = vmatprep.subr.bf16.mxu0 %v221
    %263 = vmatpush1.bf16.msra.mxu0 %v220
    %264 = vmatprep.subr.bf16.mxu0 %v219
    %265 = vmatpush1.bf16.msra.mxu0 %v218
    %266 = vmatprep.subr.bf16.mxu0 0
    %267 = vmatpush2.bf16.msra.mxu0 0
    %268 = vmatprep.subr.bf16.mxu0 0
    %269 = vmatpush2.bf16.msra.mxu0 0
    %270 = vmatprep.subr.bf16.mxu0 0
    %271 = vmatpush2.bf16.msra.mxu0 0
    %272 = vmatprep.subr.bf16.mxu0 0
    %273 = vmatpush2.bf16.msra.mxu0 0
    %274 = vmatprep.subr.bf16.mxu0 0
    %275 = vmatpush2.bf16.msra.mxu0 0
    %276 = vmatprep.subr.bf16.mxu0 0
    %277 = vmatpush2.bf16.msra.mxu0 0
    %278 = vmatprep.subr.bf16.mxu0 0
    %279 = vmatpush2.bf16.msra.mxu0 0
    %280 = vmatprep.subr.bf16.mxu0 0
    %281 = vmatpush2.bf16.msra.mxu0 0
    %282 = vmatprep.mubr.bf16.mxu0 0
    %283 = vmatmul.mubr.bf16.gmra.mxu0 %v141
    %v284 = vpop.f32.mrf.mxu0
    %v285 = vadd.f32 %v163, %v284
    %v286 = vpop.f32.mrf.mxu0
    %v287 = vadd.f32 %v167, %v286
    %v288 = vpop.f32.mrf.mxu0
    %v289 = vpop.f32.mrf.mxu0
    %290 = vdwg.mxu0
    %v291 = vmul.f32 %v287, 0.5
    %v292 = vmul.f32 %v291, 1.442695
    %v293 = vpow.pop %v292
    %v294 = vld [vmem:[#allocation5] sm:$0xff]
    %v295 = vmul.f32 %v293, %v294
    %v296 = vadd.f32 %v285, %v295
    %vm297 = vcmask 64512
    %298 = vst.msk [vmem:[#allocation10] sm:$0xff] %vm297, %v296
    %299 = vst.msk [vmem:[#allocation11] sm:$0xff] %vm297, %v285
    %300 = vst.msk [vmem:[#allocation13] sm:$0xff] %vm297, %v287
    // Predicated region
    $region42: #{tpu_custom_call.1} parent=1 // pred_check
      _
    $region43: #{tpu_custom_call.1} parent=1 // pred_check_branch
      %302 = sbr.rel (0) target = $region45
    $region44: #{tpu_custom_call.1} parent=1 // pred_region
      %s304 = ssub.s32 128, 128
      %305 = vsyncadd [#allocation4], %s304
      %s307 = sshll.u32 [#allocation10], 4
      %s308 = int_to_ptr.vmem [resolvable:$true] %s307
      %310 = dma.vmem_to_hbm [thread:$0]  %s308, 128, %s6, [#allocation4]
    $region45: #{tpu_custom_call.1} parent=1 // pred_fallthru
      _
    // Predicated region
    $region46: #{tpu_custom_call.1} parent=1 // pred_check
      _
    $region47: #{tpu_custom_call.1} parent=1 // pred_check_branch
      %312 = sbr.rel (0) target = $region49
    $region48: #{tpu_custom_call.1} parent=1 // pred_region
      %s314 = ssub.s32 128, 128
      %315 = vsyncadd [#allocation12], %s314
      %s317 = sshll.u32 [#allocation11], 4
      %s318 = int_to_ptr.vmem [resolvable:$true] %s317
      %320 = dma.vmem_to_hbm [thread:$0]  %s318, 128, %s7, [#allocation12]
    $region49: #{tpu_custom_call.1} parent=1 // pred_fallthru
      _
    // Predicated region
    $region50: #{tpu_custom_call.1} parent=1 // pred_check
      _
    $region51: #{tpu_custom_call.1} parent=1 // pred_check_branch
      %322 = sbr.rel (0) target = $region53
    $region52: #{tpu_custom_call.1} parent=1 // pred_region
      %s324 = ssub.s32 128, 128
      %325 = vsyncadd [#allocation12], %s324
      %s327 = sshll.u32 [#allocation13], 4
      %s328 = int_to_ptr.vmem [resolvable:$true] %s327
      %330 = dma.vmem_to_hbm [thread:$0]  %s328, 128, %s8, [#allocation12]
    $region53: #{tpu_custom_call.1} parent=1 // pred_fallthru
      _
    // Predicated region
    $region54: #{tpu_custom_call.1} parent=1 // pred_check
      _
    $region55: #{tpu_custom_call.1} parent=1 // pred_check_branch
      %332 = sbr.rel (0) target = $region57
    $region56: #{tpu_custom_call.1} parent=1 // pred_region
      %333 = dma.done [#allocation4], 128
    $region57: #{tpu_custom_call.1} parent=1 // pred_fallthru
      _
    // Predicated region
    $region58: #{tpu_custom_call.1} parent=1 // pred_check
      _
    $region59: #{tpu_custom_call.1} parent=1 // pred_check_branch
      %335 = sbr.rel (0) target = $region61
    $region60: #{tpu_custom_call.1} parent=1 // pred_region
      %336 = dma.done [#allocation12], 128
    $region61: #{tpu_custom_call.1} parent=1 // pred_fallthru
      _
    // Predicated region
    $region62: #{tpu_custom_call.1} parent=1 // pred_check
      _
    $region63: #{tpu_custom_call.1} parent=1 // pred_check_branch
      %338 = sbr.rel (0) target = $region65
    $region64: #{tpu_custom_call.1} parent=1 // pred_region
      %339 = dma.done [#allocation12], 128
    $region65: #{tpu_custom_call.1} parent=1 // pred_fallthru
      _
    %340 = vsyncpa [#allocation3], 1
    %341 = vsyncpa [#allocation6], 1
    %342 = vsyncpa [#allocation9], 1
    %343 = vsyncpa [#allocation4], 1
    %344 = vsyncpa [#allocation12], 1

</llo_original>
